<compile_context>
chip_gen: v7x
topology: tpu7x:2x2x1
jax: 0.10.0
libtpu: 0.0.40
codegen_flags: <defaults>
</compile_context>

<pallas_src>
import jax
import jax.numpy as jnp
from jax import lax
from jax.experimental import pallas as pl
from jax.experimental.pallas import tpu as pltpu


def _transposed_ln_kernel(m_ref, s_ref, x_ref, o_ref):
    # m_ref, s_ref: (1,) f32 scalar parameters in SMEM.
    # x_ref, o_ref: (TB, C, TL) tiles in VMEM; the reduction axis is C (axis 1).
    m_p = m_ref[0]
    s_p = s_ref[0]

    c = x_ref.shape[1]
    inv_c = jnp.float32(1.0 / c)

    xf = x_ref[...].astype(jnp.float32)                   # (TB, C, TL)

    # Shifted single-pass statistics: subtract a per-column pivot (channel 0)
    # before accumulating so E[d^2] - E[d]^2 does not catastrophically cancel
    # when activations are far from zero-mean.  Costs one extra VPU sub per
    # element, which is free while HBM-bound.
    pivot = xf[:, 0:1, :]                                  # (TB, 1, TL)
    d = xf - pivot
    sum_d = jnp.sum(d, axis=1, keepdims=True)              # (TB, 1, TL)
    sum_d2 = jnp.sum(d * d, axis=1, keepdims=True)         # (TB, 1, TL)
    mean_d = sum_d * inv_c
    var = sum_d2 * inv_c - mean_d * mean_d                 # population variance
    var = jnp.maximum(var, jnp.float32(0.0))               # guard fp cancellation

    # s / std == s * rsqrt(var): single EUP op, no divide on the critical path.
    # var == 0 -> scale = inf, matching torch's divide-by-zero-std behavior.
    scale = s_p * lax.rsqrt(var)                           # (TB, 1, TL)
    shift = m_p - (pivot + mean_d)                         # (m - mean), one row

    o_ref[...] = ((xf + shift) * scale).astype(o_ref.dtype)


# ~4 MiB of f32-equivalent working set per block: big enough to amortize the
# ~0.35 us per-step pipeline overhead, small enough that in/out double
# buffering plus f32 intermediates stay well under v7x's 64 MiB/TC VMEM
# (and under the explicit 40 MiB scoped limit we request below).
_ELEM_BUDGET = (4 * 1024 * 1024) // 4
_TL_CANDIDATES = (32768, 16384, 8192, 4096, 2048, 1024, 512, 256, 128)


def _choose_tiles(B, C, Lp):
    """Pick (TB, TL) for the (TB, C, TL) block.  Lp is a multiple of 128."""
    # TL: largest lane-aligned divisor of Lp fitting the budget (at TB=1).
    tl = 128
    for cand in _TL_CANDIDATES:
        if Lp % cand == 0 and C * cand <= _ELEM_BUDGET:
            tl = cand
            break

    # v7x has 2 TensorCores: when there is only one batch, make sure the L
    # axis is split at least two ways so the grid has >= 2 steps.
    if B == 1 and tl == Lp and Lp > 128:
        tl = Lp // 2 if (Lp // 2) % 128 == 0 else 128

    # TB: largest divisor of B whose block still fits the budget and does not
    # collapse the grid to a single step (keeps both v7x cores busy).
    tb = 1
    for cand in range(B, 0, -1):
        if B % cand != 0:
            continue
        if cand * C * tl > _ELEM_BUDGET:
            continue
        if cand > 1 and (B // cand) * (Lp // tl) < 2:
            continue
        tb = cand
        break
    return tb, tl


def transposed_ln(x, m_param, s_param):
    """x: (B, C, L); m_param, s_param: scalar parameters (shape (1,) or ())."""
    B, C, L = x.shape
    m_param = jnp.asarray(m_param, jnp.float32).reshape((1,))
    s_param = jnp.asarray(s_param, jnp.float32).reshape((1,))

    # Pad L to a lane multiple (128) so every block / store is lane-dense
    # (avoids masked vst.msk partial stores and full-(C, L) fallback blocks).
    # Padding is along L, which is independent of the C reduction, so padded
    # columns never contaminate real outputs; they are sliced off below.
    Lp = -(-L // 128) * 128
    x_in = x if Lp == L else jnp.pad(x, ((0, 0), (0, 0), (0, Lp - L)))

    tb, tl = _choose_tiles(B, C, Lp)
    grid = (B // tb, Lp // tl)

    itemsize = x.dtype.itemsize
    cost = pl.CostEstimate(
        flops=8 * B * C * Lp,          # shifted stats + normalize pass
        transcendentals=B * Lp,        # rsqrt per column
        bytes_accessed=2 * B * C * Lp * itemsize,
    )

    # 2 buffers x (in + out) at the block size, plus f32 intermediates,
    # comfortably fits 40 MiB for budget-respecting tiles on every generation
    # (v5e/v6e: 128 MiB physical; v7x: 64 MiB/TC).  Bump only for pathological
    # shapes (huge C) where even a 128-lane block exceeds the budget.
    block_bytes_f32 = tb * C * tl * 4
    vmem_limit = int(min(128 << 20, max(40 << 20, 8 * block_bytes_f32)))

    out = pl.pallas_call(
        _transposed_ln_kernel,
        out_shape=jax.ShapeDtypeStruct((B, C, Lp), x.dtype),
        grid=grid,
        in_specs=[
            pl.BlockSpec(memory_space=pltpu.SMEM),                  # m (scalar)
            pl.BlockSpec(memory_space=pltpu.SMEM),                  # s (scalar)
            pl.BlockSpec((tb, C, tl), lambda b, l: (b, 0, l)),      # x tile
        ],
        out_specs=pl.BlockSpec((tb, C, tl), lambda b, l: (b, 0, l)),
        compiler_params=pltpu.CompilerParams(
            dimension_semantics=("parallel", "parallel"),
            vmem_limit_bytes=vmem_limit,
        ),
        cost_estimate=cost,
    )(m_param, s_param, x_in)

    return out if Lp == L else out[:, :, :L]


def transposed_ln_ref(x, m_param, s_param):
    """Pure-JAX reference mirroring the PyTorch forward."""
    xf = x.astype(jnp.float32)
    mean = jnp.mean(xf, axis=-2, keepdims=True)
    std = jnp.sqrt(jnp.mean((xf - mean) ** 2, axis=-2, keepdims=True))
    y = s_param.reshape(()) / std * (xf - mean + m_param.reshape(()))
    return y.astype(x.dtype)


if __name__ == "__main__":
    key = jax.random.PRNGKey(0)

    # Small shapes consistent with the module: (batch, d, seq)
    B, C, L = 2, 4, 16
    x = jax.random.normal(key, (B, C, L), dtype=jnp.float32)

    # Deterministic parameter init, matching nn.Parameter(zeros(1)) / ones(1)
    m_param = jnp.zeros((1,), dtype=jnp.float32)
    s_param = jnp.ones((1,), dtype=jnp.float32)

    y = transposed_ln(x, m_param, s_param)
    y = jax.block_until_ready(y)

    y_ref = transposed_ln_ref(x, m_param, s_param)
    assert y.shape == x.shape and y.dtype == x.dtype
    assert jnp.allclose(y, y_ref, atol=1e-5, rtol=1e-5), "mismatch vs reference"

    print("KERNEL_OK")
</pallas_src>

<mosaic_0001>
module attributes {stable_mosaic.version = 11 : i64} {
  func.func @_transposed_ln_kernel(%arg0: i32, %arg1: i32, %arg2: memref<1xf32, #tpu.memory_space<smem>>, %arg3: memref<1xf32, #tpu.memory_space<smem>>, %arg4: memref<1x4x128xf32, #tpu.memory_space<vmem>>, %arg5: memref<1x4x128xf32, #tpu.memory_space<vmem>>) attributes {dimension_semantics = [#tpu.dimension_semantics<parallel>, #tpu.dimension_semantics<parallel>], iteration_bounds = array<i64: 2, 1>, scalar_prefetch = 0 : i64, scratch_operands = 0 : i64, tpu.core_type = #tpu.core_type<tc>, window_params = [{transform_indices = @transform_0, window_bounds = array<i64: 1>}, {transform_indices = @transform_1, window_bounds = array<i64: 1>}, {transform_indices = @transform_2, window_bounds = array<i64: 1, 4, 128>}, {transform_indices = @transform_3, window_bounds = array<i64: 1, 4, 128>}]} {
    %c0 = arith.constant 0 : index
    %0 = memref.load %arg2[%c0] : memref<1xf32, #tpu.memory_space<smem>>
    %c0_0 = arith.constant 0 : index
    %1 = memref.load %arg3[%c0_0] : memref<1xf32, #tpu.memory_space<smem>>
    %c0_1 = arith.constant 0 : index
    %c0_2 = arith.constant 0 : index
    %c0_3 = arith.constant 0 : index
    %2 = vector.load %arg4[%c0_1, %c0_2, %c0_3] : memref<1x4x128xf32, #tpu.memory_space<vmem>>, vector<1x4x128xf32>
    %3 = vector.extract_strided_slice %2 {offsets = [0, 0, 0], sizes = [1, 1, 128], strides = [1, 1, 1]} : vector<1x4x128xf32> to vector<1x1x128xf32>
    %4 = vector.broadcast %3 : vector<1x1x128xf32> to vector<1x4x128xf32>
    %5 = arith.subf %2, %4 : vector<1x4x128xf32>
    %cst = arith.constant dense<0.000000e+00> : vector<1x128xf32>
    %6 = vector.multi_reduction <add>, %5, %cst [1] : vector<1x4x128xf32> to vector<1x128xf32>
    %7 = vector.shape_cast %6 : vector<1x128xf32> to vector<1x1x128xf32>
    %8 = arith.mulf %5, %5 : vector<1x4x128xf32>
    %cst_4 = arith.constant dense<0.000000e+00> : vector<1x128xf32>
    %9 = vector.multi_reduction <add>, %8, %cst_4 [1] : vector<1x4x128xf32> to vector<1x128xf32>
    %10 = vector.shape_cast %9 : vector<1x128xf32> to vector<1x1x128xf32>
    %cst_5 = arith.constant 2.500000e-01 : f32
    %11 = vector.broadcast %cst_5 : f32 to vector<1x1x128xf32>
    %12 = arith.mulf %7, %11 : vector<1x1x128xf32>
    %cst_6 = arith.constant 2.500000e-01 : f32
    %13 = vector.broadcast %cst_6 : f32 to vector<1x1x128xf32>
    %14 = arith.mulf %10, %13 : vector<1x1x128xf32>
    %15 = arith.mulf %12, %12 : vector<1x1x128xf32>
    %16 = arith.subf %14, %15 : vector<1x1x128xf32>
    %cst_7 = arith.constant 0.000000e+00 : f32
    %17 = vector.broadcast %cst_7 : f32 to vector<1x1x128xf32>
    %18 = arith.maximumf %16, %17 : vector<1x1x128xf32>
    %19 = math.rsqrt %18 : vector<1x1x128xf32>
    %20 = vector.broadcast %1 : f32 to vector<1x1x128xf32>
    %21 = arith.mulf %20, %19 : vector<1x1x128xf32>
    %22 = arith.addf %3, %12 : vector<1x1x128xf32>
    %23 = vector.broadcast %0 : f32 to vector<1x1x128xf32>
    %24 = arith.subf %23, %22 : vector<1x1x128xf32>
    %25 = vector.broadcast %24 : vector<1x1x128xf32> to vector<1x4x128xf32>
    %26 = arith.addf %2, %25 : vector<1x4x128xf32>
    %27 = vector.broadcast %21 : vector<1x1x128xf32> to vector<1x4x128xf32>
    %28 = arith.mulf %26, %27 : vector<1x4x128xf32>
    %c0_8 = arith.constant 0 : index
    %c0_9 = arith.constant 0 : index
    %c0_10 = arith.constant 0 : index
    %29 = vector.load %arg5[%c0_8, %c0_9, %c0_10] : memref<1x4x128xf32, #tpu.memory_space<vmem>>, vector<1x4x128xf32>
    tpu.vector_store %arg5[%c0_8, %c0_9, %c0_10], %28 {strides = array<i32>} : memref<1x4x128xf32, #tpu.memory_space<vmem>>, vector<1x4x128xf32>,
    return
  }
  func.func @transform_0(%arg0: i32, %arg1: i32) -> i32 {
    %c0_i32 = arith.constant 0 : i32
    %c0_i32_0 = arith.constant 0 : i32
    return %c0_i32 : i32
  }
  func.func @transform_1(%arg0: i32, %arg1: i32) -> i32 {
    %c0_i32 = arith.constant 0 : i32
    %c0_i32_0 = arith.constant 0 : i32
    return %c0_i32 : i32
  }
  func.func @transform_2(%arg0: i32, %arg1: i32) -> (i32, i32, i32) {
    %c0_i32 = arith.constant 0 : i32
    %c0_i32_0 = arith.constant 0 : i32
    return %arg0, %c0_i32, %arg1 : i32, i32, i32
  }
  func.func @transform_3(%arg0: i32, %arg1: i32) -> (i32, i32, i32) {
    %c0_i32 = arith.constant 0 : i32
    %c0_i32_0 = arith.constant 0 : i32
    return %arg0, %c0_i32, %arg1 : i32, i32, i32
  }
}

</mosaic_0001>

<llo_original>
// kernel: tpu_custom_call.1
$region0: #{tpu_custom_call.1}
  #allocation0 [shape = 'u32[]', space=smem, size = 0x4, offset = 0x4, fixed_abs, tag = 'smem constant byte address 0x4 - core index']
  #allocation1 [shape = 'u32[144,128]{1,0:T(1,128)}', space=vmem, size = 0x12000, scoped, tag = 'internal scratch']
  #allocation2 [shape = 'f32[1]{0:T(128)S(6)}', space=smem, size = 0x200, scoped, tag = 'scoped memory for tpu_custom_call.1']
  #allocation3 [shape = 'f32[1]{0:T(128)S(6)}', space=smem, size = 0x200, scoped, tag = 'scoped memory for tpu_custom_call.1']
  %s0 = inlined_call_operand.<no memory space> [shape: f32[1], index: 0, kind: input, shape index: {}]
  %s1 = inlined_call_operand.<no memory space> [shape: f32[1], index: 1, kind: input, shape index: {}]
  %s2 = inlined_call_operand.hbm [shape: f32[2,4,128], index: 2, kind: input, shape index: {}]
  %s3 = inlined_call_operand.hbm [shape: f32[2,4,128], index: 3, kind: output, shape index: {}]
  %s4 = sld [smem:[#allocation0]]
  $region49: #{tpu_custom_call.1} parent=0
    _
  %s6 = ssub.s32 1, %s4
  %s7 = scalar_select 0, %s6, %s4
  %8 = sst [smem:[#allocation2]] %s0
  %9 = sst [smem:[#allocation3]] %s1
  $region1: #{tpu_custom_call.1} parent=0
    #allocation4 [shape = 'u8[4096]{0}', space=vmem, size = 0x1000, scoped, tag = 'input window, operand 2']
    #allocation5 [shape = 's32[2]{0}', space=sflag, size = 0x8, scoped, tag = 'scoped memory for tpu_custom_call.1']
    #allocation6 [shape = 's32[2]{0}', space=sflag, size = 0x8, scoped, tag = 'scoped memory for tpu_custom_call.1']
    #allocation7 [shape = 'u8[4096]{0}', space=vmem, size = 0x1000, scoped, tag = 'output window, operand 0']
    %10 = vsyncpa [#allocation5], 0
    %s11 = scalar_lea.sflag [#allocation5], 1
    %12 = vsyncpa %s11, 0
    %13 = vsyncpa [#allocation6], 0
    %s14 = scalar_lea.sflag [#allocation6], 1
    %15 = vsyncpa %s14, 0
    loop: start=0, step=1, limit=4
    $region2: #{tpu_custom_call.1} parent=1 // loop_pre_header
      _
    $region3: #{tpu_custom_call.1} parent=1 // loop_header
      %s17 = sphi 0, %s21
      %p18 = scmp.ge.s32.totalorder %s17, 4
      %s24 = sphi 0, %s36
      %s25 = sphi 0, %s32
      %s26 = sphi 0, %s24
      %s27 = sphi 0, %s25
      %s28 = sphi 0, %s26
      %s29 = sphi 0, %s27
      %s37 = sphi 0, %s37
      %s39 = sphi 0, %s37
      %s40 = sphi 0, %s39
      %s54 = sphi 0, %s40
      %s58 = sphi 0, %s58
      %s60 = sphi 0, %s58
      %s61 = sphi 0, %s60
      %s75 = sphi 0, %s61
      %s83 = sphi 0, %s85
      %s86 = sphi 0, %s83
      %s87 = sphi 0, %s86
      %s103 = sphi 0, %s87
      %s111 = sphi 0, %s113
      %s114 = sphi 0, %s111
      %s115 = sphi 0, %s114
      %s131 = sphi 0, %s115
    $region4: #{tpu_custom_call.1} parent=1 // loop_header_branch
      %20 = sbr.rel (%p18) target = $region8
    $region5: #{tpu_custom_call.1} parent=1 // loop_body
      %s22 = ssub.s32 %s17, 1
      %s23 = ssub.s32 %s17, 2
      %s30 = sadd.s32 1, %s25
      %p31 = scmp.ge.s32.totalorder %s30, 1
      %s32 = scalar_select %p31, 0, %s30
      %s33 = sadd.s32 1, %s24
      %s34 = scalar_select %p31, %s33, %s24
      %p35 = scmp.ge.s32.totalorder %s34, 2
      %s36 = scalar_select %p35, 0, %s34
      %s38 = sadd.s32 %s37, 1
      %p41 = scmp.eq.s32.totalorder %s17, 1
      %p42 = scmp.ne.s32.totalorder %s37, %s39
      %p43 = scmp.eq.s32.totalorder %s17, 0
      %p44 = por %p42, %p43
      %p45 = scmp.ne.s32.totalorder %s37, %s39
      %p46 = scmp.eq.s32.totalorder %s22, 1
      %p47 = por %p45, %p46
      %p48 = scmp.ne.s32.totalorder %s39, %s40
      %p49 = scmp.eq.s32.totalorder %s22, 0
      %p50 = por %p48, %p49
      %p51 = scmp.ne.s32.totalorder %s39, %s40
      %p52 = scmp.eq.s32.totalorder %s23, 1
      %p53 = por %p51, %p52
      %p55 = scmp.ne.s32.totalorder %s40, %s54
      %p56 = scmp.eq.s32.totalorder %s23, 0
      %p57 = por %p55, %p56
      %s59 = sadd.s32 %s58, 1
      %p62 = scmp.eq.s32.totalorder %s17, 1
      %p63 = scmp.ne.s32.totalorder %s58, %s60
      %p64 = scmp.eq.s32.totalorder %s17, 0
      %p65 = por %p63, %p64
      %p66 = scmp.ne.s32.totalorder %s58, %s60
      %p67 = scmp.eq.s32.totalorder %s22, 1
      %p68 = por %p66, %p67
      %p69 = scmp.ne.s32.totalorder %s60, %s61
      %p70 = scmp.eq.s32.totalorder %s22, 0
      %p71 = por %p69, %p70
      %p72 = scmp.ne.s32.totalorder %s60, %s61
      %p73 = scmp.eq.s32.totalorder %s23, 1
      %p74 = por %p72, %p73
      %p76 = scmp.ne.s32.totalorder %s61, %s75
      %p77 = scmp.eq.s32.totalorder %s23, 0
      %p78 = por %p76, %p77
      %s79 = ssub.s32 %s24, %s36
      %s80 = ssub.s32 %s25, %s32
      %s81 = sor.u32 %s79, %s80
      %p82 = scmp.eq.s32.totalorder %s81, 0
      %s84 = sadd.s32 %s83, 1
      %s85 = scalar_select %p82, %s83, %s84
      %p88 = pneg %p82
      %p89 = scmp.eq.s32.totalorder %s17, 1
      %p90 = por %p88, %p89
      %p91 = scmp.ne.s32.totalorder %s83, %s86
      %p92 = scmp.eq.s32.totalorder %s17, 0
      %p93 = por %p91, %p92
      %p94 = scmp.ne.s32.totalorder %s83, %s86
      %p95 = scmp.eq.s32.totalorder %s22, 1
      %p96 = por %p94, %p95
      %p97 = scmp.ne.s32.totalorder %s86, %s87
      %p98 = scmp.eq.s32.totalorder %s22, 0
      %p99 = por %p97, %p98
      %p100 = scmp.ne.s32.totalorder %s86, %s87
      %p101 = scmp.eq.s32.totalorder %s23, 1
      %p102 = por %p100, %p101
      %p104 = scmp.ne.s32.totalorder %s87, %s103
      %p105 = scmp.eq.s32.totalorder %s23, 0
      %p106 = por %p104, %p105
      %s107 = ssub.s32 %s24, %s36
      %s108 = ssub.s32 %s25, %s32
      %s109 = sor.u32 %s107, %s108
      %p110 = scmp.eq.s32.totalorder %s109, 0
      %s112 = sadd.s32 %s111, 1
      %s113 = scalar_select %p110, %s111, %s112
      %p116 = pneg %p110
      %p117 = scmp.eq.s32.totalorder %s17, 1
      %p118 = por %p116, %p117
      %p119 = scmp.ne.s32.totalorder %s111, %s114
      %p120 = scmp.eq.s32.totalorder %s17, 0
      %p121 = por %p119, %p120
      %p122 = scmp.ne.s32.totalorder %s111, %s114
      %p123 = scmp.eq.s32.totalorder %s22, 1
      %p124 = por %p122, %p123
      %p125 = scmp.ne.s32.totalorder %s114, %s115
      %p126 = scmp.eq.s32.totalorder %s22, 0
      %p127 = por %p125, %p126
      %p128 = scmp.ne.s32.totalorder %s114, %s115
      %p129 = scmp.eq.s32.totalorder %s23, 1
      %p130 = por %p128, %p129
      %p132 = scmp.ne.s32.totalorder %s115, %s131
      %p133 = scmp.eq.s32.totalorder %s23, 0
      %p134 = por %p132, %p133
      %p135 = scmp.le.s32.totalorder 1, %s17
      %p136 = scmp.lt.s32.totalorder %s17, 3
      %p137 = pnand %p135, %p136
      %p138 = pneg %p137
      // Predicated region
      $region9: #{tpu_custom_call.1} parent=5 // pred_check
        _
      $region10: #{tpu_custom_call.1} parent=5 // pred_check_branch
        %140 = sbr.rel (%p137) target = $region12
      $region11: #{tpu_custom_call.1} parent=5 // pred_region
        %s141 = ssub.s32 %s17, 1
        // Predicated region
        $region13: #{tpu_custom_call.1} parent=11 // pred_check
          %p142 = pneg %p50
        $region14: #{tpu_custom_call.1} parent=11 // pred_check_branch
          %144 = sbr.rel (%p142) target = $region16
        $region15: #{tpu_custom_call.1} parent=11 // pred_region
          _
        $region16: #{tpu_custom_call.1} parent=11 // pred_fallthru
          _
        // Predicated region
        $region17: #{tpu_custom_call.1} parent=11 // pred_check
          %p145 = pneg %p71
        $region18: #{tpu_custom_call.1} parent=11 // pred_check_branch
          %147 = sbr.rel (%p145) target = $region20
        $region19: #{tpu_custom_call.1} parent=11 // pred_region
          _
        $region20: #{tpu_custom_call.1} parent=11 // pred_fallthru
          _
      $region12: #{tpu_custom_call.1} parent=5 // pred_fallthru
        _
      %p148 = scmp.lt.s32.totalorder %s17, 2
      // Predicated region
      $region21: #{tpu_custom_call.1} parent=5 // pred_check
        %p149 = pneg %p148
      $region22: #{tpu_custom_call.1} parent=5 // pred_check_branch
        %151 = sbr.rel (%p149) target = $region24
      $region23: #{tpu_custom_call.1} parent=5 // pred_region
        // Predicated region
        $region25: #{tpu_custom_call.1} parent=23 // pred_check
          %p152 = pneg %p93
        $region26: #{tpu_custom_call.1} parent=23 // pred_check_branch
          %154 = sbr.rel (%p152) target = $region28
        $region27: #{tpu_custom_call.1} parent=23 // pred_region
          %s155 = sand.u32 %s83, 1
          %s156 = scalar_lea.sflag [#allocation5], %s155
          %s157 = sand.u32 %s83, 1
          %s158 = smul.addr %s157, 4
          %s159 = scalar_lea.vmem [#allocation4], %s158
          %s161 = ssub.s32 64, 64
          %162 = vsyncadd %s156, %s161
          %s163 = sadd.s32 %s25, %s24
          %s164 = smul.addr %s163, 64
          %s165 = scalar_lea.hbm %s2, %s164
          %s167 = sshll.u32 %s159, 4
          %s168 = int_to_ptr.vmem [resolvable:$true] %s167
          %170 = dma.hbm_to_vmem [thread:$0]  %s165, 64, %s168, %s156
        $region28: #{tpu_custom_call.1} parent=23 // pred_fallthru
          _
      $region24: #{tpu_custom_call.1} parent=5 // pred_fallthru
        _
      %p171 = scmp.le.s32.totalorder 1, %s17
      %p172 = scmp.lt.s32.totalorder %s17, 3
      %p173 = pnand %p171, %p172
      %p174 = pneg %p173
      // Predicated region
      $region29: #{tpu_custom_call.1} parent=5 // pred_check
        _
      $region30: #{tpu_custom_call.1} parent=5 // pred_check_branch
        %176 = sbr.rel (%p173) target = $region32
      $region31: #{tpu_custom_call.1} parent=5 // pred_region
        %s177 = ssub.s32 %s17, 1
        %s178 = sand.u32 %s86, 1
        %s179 = scalar_lea.sflag [#allocation5], %s178
        %s180 = sand.u32 %s86, 1
        %s181 = smul.addr %s180, 4
        %s182 = scalar_lea.vmem [#allocation4], %s181
        // Predicated region
        $region33: #{tpu_custom_call.1} parent=31 // pred_check
          %p183 = pneg %p99
        $region34: #{tpu_custom_call.1} parent=31 // pred_check_branch
          %185 = sbr.rel (%p183) target = $region36
        $region35: #{tpu_custom_call.1} parent=31 // pred_region
          %186 = dma.done %s179, 64
        $region36: #{tpu_custom_call.1} parent=31 // pred_fallthru
          _
        %p187 = pneg %p50
        %p188 = pneg %p47
        %p189 = pneg %p71
        %p190 = pneg %p68
        %s191 = sand.u32 %s86, 1
        %s192 = scalar_lea.sflag [#allocation5], %s191
        %s193 = sand.u32 %s86, 1
        %s194 = smul.addr %s193, 4
        %s195 = scalar_lea.vmem [#allocation4], %s194
        %p196 = pneg %p99
        %p197 = pneg %p96
        %p198 = pneg %p127
        %p199 = pneg %p124
        %s200 = sand.u32 %s114, 1
        %s201 = scalar_lea.sflag [#allocation6], %s200
        %s202 = sand.u32 %s114, 1
        %s203 = smul.addr %s202, 4
        %s204 = scalar_lea.vmem [#allocation7], %s203
        %s205 = sld [smem:[#allocation2]]
        %s206 = sld [smem:[#allocation3]]
        %v207 = vld [vmem:[%s182] sm:$0xf]
        %v208 = vlaneseq
        %v209 = vshrl.u32 %v208, 7
        %v210 = vsub.s32 0, %v209
        %v211 = vrot.slane %v207, %v210
        %v212 = vsub.f32 %v207, %v211
        %vm213 = vcmask 1043456
        %v214 = vsel %vm213, %v212, 0.0
        %v215 = vrot.slane %v214, 4
        %v216 = vadd.f32 %v214, %v215
        %v217 = vrot.slane %v216, 2
        %v218 = vadd.f32 %v216, %v217
        %v219 = vrot.slane %v218, 1
        %v220 = vadd.f32 %v218, %v219
        %v221 = vmul.f32 %v212, %v212
        %v222 = vsel %vm213, %v221, 0.0
        %v223 = vrot.slane %v222, 4
        %v224 = vadd.f32 %v222, %v223
        %v225 = vrot.slane %v224, 2
        %v226 = vadd.f32 %v224, %v225
        %v227 = vrot.slane %v226, 1
        %v228 = vadd.f32 %v226, %v227
        %v229 = vmul.f32 %v220, 0.25
        %v230 = vmul.f32 %v228, 0.25
        %v231 = vmul.f32 %v229, %v229
        %v232 = vsub.f32 %v230, %v231
        %v233 = vmax.f32 %v232, 0.0
        %v234 = vrsqrt.pop %v233
        %v235 = vstv %s206
        %v236 = vmul.f32 %v235, %v234
        %v237 = vadd.f32 %v207, %v229
        %v238 = vstv %s205
        %v239 = vsub.f32 %v238, %v237
        %v240 = vlaneseq
        %v241 = vshrl.u32 %v240, 7
        %v242 = vsub.s32 0, %v241
        %v243 = vrot.slane %v239, %v242
        %v244 = vadd.f32 %v207, %v243
        %v245 = vmul.f32 %v244, %v236
        %246 = vst [vmem:[%s204] sm:$0xf] %v245
        %s247 = sand.u32 %s114, 1
        %s248 = scalar_lea.sflag [#allocation6], %s247
        %s249 = sand.u32 %s114, 1
        %s250 = smul.addr %s249, 4
        %s251 = scalar_lea.vmem [#allocation7], %s250
        // Predicated region
        $region37: #{tpu_custom_call.1} parent=31 // pred_check
          %p252 = pneg %p124
        $region38: #{tpu_custom_call.1} parent=31 // pred_check_branch
          %254 = sbr.rel (%p252) target = $region40
        $region39: #{tpu_custom_call.1} parent=31 // pred_region
          %s256 = ssub.s32 64, 64
          %257 = vsyncadd %s248, %s256
          %s258 = sadd.s32 %s27, %s26
          %s259 = smul.addr %s258, 64
          %s260 = scalar_lea.hbm %s3, %s259
          %s262 = sshll.u32 %s251, 4
          %s263 = int_to_ptr.vmem [resolvable:$true] %s262
          %265 = dma.vmem_to_hbm [thread:$0]  %s263, 64, %s260, %s248
        $region40: #{tpu_custom_call.1} parent=31 // pred_fallthru
          _
      $region32: #{tpu_custom_call.1} parent=5 // pred_fallthru
        _
      %p266 = scmp.le.s32.totalorder 2, %s17
      // Predicated region
      $region41: #{tpu_custom_call.1} parent=5 // pred_check
        %p267 = pneg %p266
      $region42: #{tpu_custom_call.1} parent=5 // pred_check_branch
        %269 = sbr.rel (%p267) target = $region44
      $region43: #{tpu_custom_call.1} parent=5 // pred_region
        %s270 = ssub.s32 %s17, 2
        // Predicated region
        $region45: #{tpu_custom_call.1} parent=43 // pred_check
          %p271 = pneg %p130
        $region46: #{tpu_custom_call.1} parent=43 // pred_check_branch
          %273 = sbr.rel (%p271) target = $region48
        $region47: #{tpu_custom_call.1} parent=43 // pred_region
          %s274 = sand.u32 %s115, 1
          %s275 = scalar_lea.sflag [#allocation6], %s274
          %s276 = sand.u32 %s115, 1
          %s277 = smul.addr %s276, 4
          %s278 = scalar_lea.vmem [#allocation7], %s277
          %279 = dma.done %s275, 64
        $region48: #{tpu_custom_call.1} parent=43 // pred_fallthru
          _
      $region44: #{tpu_custom_call.1} parent=5 // pred_fallthru
        _
    $region6: #{tpu_custom_call.1} parent=1 // loop_footer
      %s21 = sadd.s32 1, %s17
    $region7: #{tpu_custom_call.1} parent=1 // loop_footer_branch
      %16 = sbr.rel target = $region3
    $region8: #{tpu_custom_call.1} parent=1 // loop_exit
      _
    %280 = vsyncpa [#allocation5], 1
    %s281 = scalar_lea.sflag [#allocation5], 1
    %282 = vsyncpa %s281, 1
    %283 = vsyncpa [#allocation6], 1
    %s284 = scalar_lea.sflag [#allocation6], 1
    %285 = vsyncpa %s284, 1

</llo_original>
